<compile_context>
chip_gen: v6e
topology: v6e:2x2x1
jax: 0.10.0
libtpu: 0.0.40
codegen_flags: <defaults>
</compile_context>

<pallas_src>
import math
from functools import partial

import jax
import jax.numpy as jnp
from jax.experimental import pallas as pl
from jax.experimental.pallas import tpu as pltpu


def _round_up(x, m):
    return (x + m - 1) // m * m


def _cdiv(a, b):
    return (a + b - 1) // b


def _vmem_capacity_bytes():
    try:
        info = pltpu.get_tpu_info()
        cap = getattr(info, "vmem_capacity_bytes", None)
        if cap:
            return int(cap)
    except Exception:
        pass
    return 64 << 20  # conservative default (v7x per-TC VMEM)


def _qt_intermediate_kernel(x_ref, w_ref, b_ref, o_ref, acc_ref, *,
                            approximate=False):
    # x_ref: (tm, tk)   activations
    # w_ref: (tn, tk)   weight in native PyTorch (I, H) layout
    # b_ref: (1, tn)    bias
    # o_ref: (tm, tn)   output tile
    # acc_ref: (tm, tn) f32 scratch accumulator (carried across the k axis)
    k = pl.program_id(2)

    @pl.when(k == 0)
    def _():
        acc_ref[...] = jnp.zeros_like(acc_ref)

    # NT contraction: contract the last (H) dim of both operands, so the MXU
    # consumes the weight-stationary [N, K] tile directly (no wrapper-side or
    # in-kernel transpose of the weight slab).
    acc_ref[...] += jax.lax.dot_general(
        x_ref[...], w_ref[...], (((1,), (1,)), ((), ())),
        preferred_element_type=jnp.float32)

    @pl.when(k == pl.num_programs(2) - 1)
    def _():
        y = acc_ref[...] + b_ref[...].astype(jnp.float32)
        if approximate:
            # tanh-approx GELU: exp/tanh run on the otherwise-idle EUP slot.
            c = jnp.float32(math.sqrt(2.0 / math.pi))
            y = 0.5 * y * (1.0 + jnp.tanh(c * (y + jnp.float32(0.044715) * y * y * y)))
        else:
            # exact ESM gelu: x * 0.5 * (1 + erf(x / sqrt(2)))
            y = y * 0.5 * (1.0 + jax.lax.erf(y * jnp.float32(1.0 / math.sqrt(2.0))))
        o_ref[...] = y.astype(o_ref.dtype)


_TM_CANDIDATES = (256, 128, 64, 32, 16, 8)
_TN_CANDIDATES = (1024, 768, 512, 384, 256, 128)


def _choose_tm(M):
    # Largest M tile that does not pad M by more than ~25% over the 8-multiple.
    m8 = _round_up(M, 8)
    for c in _TM_CANDIDATES:
        if _round_up(M, c) <= m8 * 1.25:
            return c
    return 8


def _max_tk(tm, tn, in_bytes, out_bytes, budget):
    # Largest K tile (multiple of 128) whose double-buffered working set fits.
    fixed = 2 * tm * tn * out_bytes + tm * tn * 4 + 2 * tn * 4
    avail = budget / 1.15 - fixed
    if avail <= 0:
        return 0
    tk = int(avail // (2 * (tm + tn) * in_bytes))
    return (tk // 128) * 128


def _choose_tiles(M, I, H, in_bytes, out_bytes, budget):
    tm = _choose_tm(M)
    i128 = _round_up(I, 128)
    h128 = _round_up(H, 128)
    cands = [c for c in _TN_CANDIDATES if c <= i128] or [128]
    divisors = [c for c in cands if i128 % c == 0]
    order = divisors + [c for c in cands if i128 % c != 0]
    for tn in order:
        mtk = _max_tk(tm, tn, in_bytes, out_bytes, budget)
        if mtk >= 128:
            nk = _cdiv(h128, mtk)
            tk = _round_up(_cdiv(h128, nk), 128)
            return tm, tn, tk
    # Fallback: smallest tiles; compiler scoped-VMEM limit is set accordingly.
    return tm, 128, 128


def qt_intermediate(hidden_states, weight, bias, *, tm=None, tn=None, tk=None,
                    matmul_dtype=None, approximate_gelu=False):
    """hidden_states: (B, S, H)
       weight:        (I, H)   (PyTorch nn.Linear layout, NOT transposed)
       bias:          (I,)
       returns:       (B, S, I) in hidden_states.dtype
    """
    B, S, H = hidden_states.shape
    I, H_w = weight.shape
    assert H_w == H, "weight must be (intermediate_size, hidden_size)"
    M = B * S

    out_dtype = hidden_states.dtype
    compute_dtype = (jnp.dtype(matmul_dtype) if matmul_dtype is not None
                     else jnp.dtype(hidden_states.dtype))
    in_bytes = compute_dtype.itemsize
    out_bytes = jnp.dtype(out_dtype).itemsize

    vmem_cap = _vmem_capacity_bytes()
    budget = (vmem_cap * 5) // 8          # ~40 MiB on v7x, ~80 MiB on v5e/v6e

    a_tm, a_tn, a_tk = _choose_tiles(M, I, H, in_bytes, out_bytes, budget)
    tm = a_tm if tm is None else tm
    tn = a_tn if tn is None else tn
    tk = a_tk if tk is None else tk
    assert tm % 8 == 0 and tn % 128 == 0 and tk % 128 == 0, \
        "tm must be a multiple of 8; tn, tk multiples of 128"

    M_pad = _round_up(M, tm)
    I_pad = _round_up(I, tn)
    K_pad = _round_up(H, tk)
    ni, nj, nk = M_pad // tm, I_pad // tn, K_pad // tk

    # Cast reduced-precision matmul inputs in the wrapper (HBM-resident), so
    # DMA bytes and VMEM tiles are already narrow.
    # TODO(synk): store the weight pre-cast / pre-padded at parameter-init time
    # so nothing below touches the full weight on every call.
    x2d = hidden_states.reshape(M, H)
    w = weight
    if x2d.dtype != compute_dtype:
        x2d = x2d.astype(compute_dtype)
    if w.dtype != compute_dtype:
        w = w.astype(compute_dtype)
    if M_pad != M or K_pad != H:
        x2d = jnp.pad(x2d, ((0, M_pad - M), (0, K_pad - H)))   # inert padding
    if I_pad != I or K_pad != H:
        w = jnp.pad(w, ((0, I_pad - I), (0, K_pad - H)))        # inert padding
    b2d = jnp.pad(bias.astype(jnp.float32), (0, I_pad - I)).reshape(1, I_pad)

    # Megacore split: shard the grid axis of the more expensive operand stream
    # so the two cores do not both fetch the dominant operand.
    weight_traffic = (ni if nk > 1 else 1) * I_pad * K_pad * in_bytes
    act_traffic = nj * M_pad * K_pad * in_bytes
    if weight_traffic >= act_traffic:
        dims = ("parallel", "arbitrary", "arbitrary")     # split on j (weights)
    else:
        dims = ("arbitrary", "parallel", "arbitrary")     # split on i (activations)

    # Size-gated pipeline-depth tweaks (never triggered at toy/test sizes).
    x_spec_kwargs = {}
    w_spec_kwargs = {}
    if nk == 1 and tn * tk * in_bytes >= (4 << 20) and vmem_cap <= (80 << 20):
        # Resident weight slab on a VMEM-tight chip: double-buffering it burns
        # VMEM for a DMA that is exposed only nj times.
        w_spec_kwargs["pipeline_mode"] = pl.Buffered(1)
    if in_bytes <= 2 and tm * tk * in_bytes >= (1 << 20):
        # bf16 regime: per-step MXU time drops below the x-tile DMA; deepen.
        x_spec_kwargs["pipeline_mode"] = pl.Buffered(3)

    x_bufs = 3 if "pipeline_mode" in x_spec_kwargs else 2
    w_bufs = 1 if "pipeline_mode" in w_spec_kwargs else 2
    est = (x_bufs * tm * tk * in_bytes + w_bufs * tn * tk * in_bytes
           + 2 * tm * tn * out_bytes + tm * tn * 4 + 2 * tn * 4)
    vmem_limit = int(est * 1.25) + (2 << 20)
    vmem_limit = max(16 << 20, min(vmem_limit, budget))

    cost = pl.CostEstimate(
        flops=2 * M_pad * I_pad * K_pad,
        transcendentals=M_pad * I_pad,
        bytes_accessed=(in_bytes * (M_pad * K_pad + I_pad * K_pad)
                        + out_bytes * M_pad * I_pad + 4 * I_pad),
    )

    kernel = partial(_qt_intermediate_kernel, approximate=approximate_gelu)

    out = pl.pallas_call(
        kernel,
        out_shape=jax.ShapeDtypeStruct((M_pad, I_pad), out_dtype),
        grid_spec=pltpu.PrefetchScalarGridSpec(
            num_scalar_prefetch=0,
            grid=(nj, ni, nk),   # j (I tiles) outer, i (M tiles), k (H) inner
            in_specs=[
                pl.BlockSpec((tm, tk), lambda j, i, k: (i, k), **x_spec_kwargs),
                pl.BlockSpec((tn, tk), lambda j, i, k: (j, k), **w_spec_kwargs),
                pl.BlockSpec((1, tn), lambda j, i, k: (0, j)),
            ],
            out_specs=pl.BlockSpec((tm, tn), lambda j, i, k: (i, j)),
            scratch_shapes=[pltpu.VMEM((tm, tn), jnp.float32)],
        ),
        compiler_params=pltpu.CompilerParams(
            dimension_semantics=dims,
            vmem_limit_bytes=vmem_limit,
        ),
        cost_estimate=cost,
    )(x2d, w, b2d)

    if M_pad != M or I_pad != I:
        out = out[:M, :I]
    return out.reshape(B, S, I)


def _reference(hidden_states, weight, bias):
    y = jnp.einsum(
        "bsh,ih->bsi",
        hidden_states.astype(jnp.float32), weight.astype(jnp.float32),
        precision=jax.lax.Precision.HIGHEST,
        preferred_element_type=jnp.float32,
    ) + bias.astype(jnp.float32)
    return y * 0.5 * (1.0 + jax.lax.erf(y / jnp.float32(math.sqrt(2.0))))


def _make_inputs(key, batch, seq, hidden, intermediate):
    k_x, k_w, k_b = jax.random.split(key, 3)
    hidden_states = jax.random.normal(k_x, (batch, seq, hidden), dtype=jnp.float32)
    bound = 1.0 / math.sqrt(hidden)
    weight = jax.random.uniform(k_w, (intermediate, hidden), jnp.float32, -bound, bound)
    bias = jax.random.uniform(k_b, (intermediate,), jnp.float32, -bound, bound)
    return hidden_states, weight, bias


if __name__ == "__main__":
    # 1) Small config matching the module defaults (hidden=32, intermediate=64).
    hs, w, b = _make_inputs(jax.random.PRNGKey(0), 2, 8, 32, 64)
    out = jax.block_until_ready(qt_intermediate(hs, w, b))
    ref = _reference(hs, w, b)
    assert out.shape == (2, 8, 64)
    assert jnp.allclose(out, ref, atol=1e-5, rtol=1e-5), "mismatch (small, f32)"

    # 2) Medium config with forced small tiles: multi-tile grid over M/I/K,
    #    exercises the f32 accumulator + pl.when finalize path (nk=2).
    hs2, w2, b2 = _make_inputs(jax.random.PRNGKey(1), 2, 192, 256, 1024)
    out2 = jax.block_until_ready(qt_intermediate(hs2, w2, b2, tn=256, tk=128))
    ref2 = _reference(hs2, w2, b2)
    assert out2.shape == (2, 192, 1024)
    assert jnp.allclose(out2, ref2, atol=1e-4, rtol=1e-4), "mismatch (tiled, f32)"

    # 3) bf16 matmul inputs cast in the wrapper (HBM-resident), f32 accumulation;
    #    loosened tolerance vs the exact f32 reference.
    out3 = jax.block_until_ready(
        qt_intermediate(hs2, w2, b2, matmul_dtype=jnp.bfloat16))
    assert out3.shape == (2, 192, 1024)
    assert jnp.allclose(out3, ref2, atol=2e-2, rtol=2e-2), "mismatch (bf16)"

    # 4) tanh-approx GELU epilogue (EUP path) smoke + accuracy check.
    out4 = jax.block_until_ready(qt_intermediate(hs, w, b, approximate_gelu=True))
    assert jnp.allclose(out4, ref, atol=1e-2, rtol=1e-2), "mismatch (approx gelu)"

    print("KERNEL_OK")
</pallas_src>

<mosaic_0001>
module attributes {stable_mosaic.version = 11 : i64} {
  func.func @_qt_intermediate_kernel(%arg0: i32, %arg1: i32, %arg2: i32, %arg3: memref<16x128xf32, #tpu.memory_space<vmem>>, %arg4: memref<128x128xf32, #tpu.memory_space<vmem>>, %arg5: memref<1x128xf32, #tpu.memory_space<vmem>>, %arg6: memref<16x128xf32, #tpu.memory_space<vmem>>, %arg7: memref<16x128xf32, #tpu.memory_space<vmem>>) attributes {dimension_semantics = [#tpu.dimension_semantics<parallel>, #tpu.dimension_semantics<arbitrary>, #tpu.dimension_semantics<arbitrary>], iteration_bounds = array<i64: 1, 1, 1>, scalar_prefetch = 0 : i64, scratch_operands = 1 : i64, tpu.core_type = #tpu.core_type<tc>, window_params = [{transform_indices = @transform_0, window_bounds = array<i64: 16, 128>}, {transform_indices = @transform_1, window_bounds = array<i64: 128, 128>}, {transform_indices = @transform_2, window_bounds = array<i64: 1, 128>}, {transform_indices = @transform_3, window_bounds = array<i64: 16, 128>}]} {
    %c0_i32 = arith.constant 0 : i32
    %0 = arith.cmpi eq, %arg2, %c0_i32 : i32
    %1 = arith.extui %0 : i1 to i32
    %c0_i32_0 = arith.constant 0 : i32
    %2 = arith.cmpi ne, %1, %c0_i32_0 : i32
    scf.if %2 {
      %cst_10 = arith.constant 0.000000e+00 : f32
      %12 = vector.broadcast %cst_10 : f32 to vector<16x128xf32>
      %c0_11 = arith.constant 0 : index
      %c0_12 = arith.constant 0 : index
      %13 = vector.load %arg7[%c0_11, %c0_12] : memref<16x128xf32, #tpu.memory_space<vmem>>, vector<16x128xf32>
      tpu.vector_store %arg7[%c0_11, %c0_12], %12 {strides = array<i32>} : memref<16x128xf32, #tpu.memory_space<vmem>>, vector<16x128xf32>,
    } else {
    }
    %c0 = arith.constant 0 : index
    %c0_1 = arith.constant 0 : index
    %3 = vector.load %arg7[%c0, %c0_1] : memref<16x128xf32, #tpu.memory_space<vmem>>, vector<16x128xf32>
    %c0_2 = arith.constant 0 : index
    %c0_3 = arith.constant 0 : index
    %4 = vector.load %arg3[%c0_2, %c0_3] : memref<16x128xf32, #tpu.memory_space<vmem>>, vector<16x128xf32>
    %c0_4 = arith.constant 0 : index
    %c0_5 = arith.constant 0 : index
    %5 = vector.load %arg4[%c0_4, %c0_5] : memref<128x128xf32, #tpu.memory_space<vmem>>, vector<128x128xf32>
    %cst = arith.constant dense<0.000000e+00> : vector<16x128xf32>
    %6 = tpu.matmul %4, %5, %cst {dimension_numbers = #tpu.dot_dimension_numbers<[1], [1], [0], [0], [0, 0, 1, 0], [], []>} : vector<16x128xf32>, vector<128x128xf32>, vector<16x128xf32> -> vector<16x128xf32>
    %7 = arith.addf %3, %6 : vector<16x128xf32>
    %c0_6 = arith.constant 0 : index
    %c0_7 = arith.constant 0 : index
    %8 = vector.load %arg7[%c0_6, %c0_7] : memref<16x128xf32, #tpu.memory_space<vmem>>, vector<16x128xf32>
    tpu.vector_store %arg7[%c0_6, %c0_7], %7 {strides = array<i32>} : memref<16x128xf32, #tpu.memory_space<vmem>>, vector<16x128xf32>,
    %c0_i32_8 = arith.constant 0 : i32
    %9 = arith.cmpi eq, %arg2, %c0_i32_8 : i32
    %10 = arith.extui %9 : i1 to i32
    %c0_i32_9 = arith.constant 0 : i32
    %11 = arith.cmpi ne, %10, %c0_i32_9 : i32
    scf.if %11 {
      %c0_10 = arith.constant 0 : index
      %c0_11 = arith.constant 0 : index
      %12 = vector.load %arg7[%c0_10, %c0_11] : memref<16x128xf32, #tpu.memory_space<vmem>>, vector<16x128xf32>
      %c0_12 = arith.constant 0 : index
      %c0_13 = arith.constant 0 : index
      %13 = vector.load %arg5[%c0_12, %c0_13] : memref<1x128xf32, #tpu.memory_space<vmem>>, vector<1x128xf32>
      %14 = vector.broadcast %13 : vector<1x128xf32> to vector<16x128xf32>
      %15 = arith.addf %12, %14 : vector<16x128xf32>
      %cst_14 = arith.constant 5.000000e-01 : f32
      %16 = vector.broadcast %cst_14 : f32 to vector<16x128xf32>
      %17 = arith.mulf %15, %16 : vector<16x128xf32>
      %cst_15 = arith.constant 0.707106769 : f32
      %18 = vector.broadcast %cst_15 : f32 to vector<16x128xf32>
      %19 = arith.mulf %15, %18 : vector<16x128xf32>
      %20 = math.erf %19 : vector<16x128xf32>
      %cst_16 = arith.constant 1.000000e+00 : f32
      %21 = vector.broadcast %cst_16 : f32 to vector<16x128xf32>
      %22 = arith.addf %21, %20 : vector<16x128xf32>
      %23 = arith.mulf %17, %22 : vector<16x128xf32>
      %c0_17 = arith.constant 0 : index
      %c0_18 = arith.constant 0 : index
      %24 = vector.load %arg6[%c0_17, %c0_18] : memref<16x128xf32, #tpu.memory_space<vmem>>, vector<16x128xf32>
      tpu.vector_store %arg6[%c0_17, %c0_18], %23 {strides = array<i32>} : memref<16x128xf32, #tpu.memory_space<vmem>>, vector<16x128xf32>,
    } else {
    }
    return
  }
  func.func @transform_0(%arg0: i32, %arg1: i32, %arg2: i32) -> (i32, i32) {
    %c0_i32 = arith.constant 0 : i32
    return %arg1, %arg2 : i32, i32
  }
  func.func @transform_1(%arg0: i32, %arg1: i32, %arg2: i32) -> (i32, i32) {
    %c0_i32 = arith.constant 0 : i32
    return %arg0, %arg2 : i32, i32
  }
  func.func @transform_2(%arg0: i32, %arg1: i32, %arg2: i32) -> (i32, i32) {
    %c0_i32 = arith.constant 0 : i32
    %c0_i32_0 = arith.constant 0 : i32
    return %c0_i32, %arg0 : i32, i32
  }
  func.func @transform_3(%arg0: i32, %arg1: i32, %arg2: i32) -> (i32, i32) {
    %c0_i32 = arith.constant 0 : i32
    return %arg1, %arg0 : i32, i32
  }
}

</mosaic_0001>

<llo_original>
// kernel: tpu_custom_call.1
$region0: #{tpu_custom_call.1}
  #allocation0 [shape = 'u32[]', space=smem, size = 0x4, offset = 0x4, fixed_abs, tag = 'smem constant byte address 0x4 - core index']
  #allocation1 [shape = 'u32[144,128]{1,0:T(1,128)}', space=vmem, size = 0x12000, scoped, tag = 'internal scratch']
  #allocation2 [shape = 'f32[16,128]{1,0:T(8,128)}', space=vmem, size = 0x2000, scoped, tag = 'scratch operand']
  %s0 = inlined_call_operand.hbm [shape: f32[16,128], index: 0, kind: input, shape index: {}]
  %s1 = inlined_call_operand.hbm [shape: f32[128,128], index: 1, kind: input, shape index: {}]
  %s2 = inlined_call_operand.vmem [shape: f32[1,128], index: 2, kind: input, shape index: {}]
  %s3 = inlined_call_operand.hbm [shape: f32[16,128], index: 3, kind: output, shape index: {}]
  %s4 = sld [smem:[#allocation0]]
  $region38: #{tpu_custom_call.1} parent=0
    _
  %s6 = ssub.s32 1, %s4
  %s7 = scalar_select 0, %s6, %s4
  $region1: #{tpu_custom_call.1} parent=0
    #allocation3 [shape = 'u8[8192]{0}', space=vmem, size = 0x2000, scoped, tag = 'input window, operand 0, single buffered']
    #allocation4 [shape = 's32[1]{0}', space=sflag, size = 0x4, scoped, tag = 'scoped memory for tpu_custom_call.1']
    #allocation5 [shape = 's32[1]{0}', space=sflag, size = 0x4, scoped, tag = 'scoped memory for tpu_custom_call.1']
    #allocation6 [shape = 'u8[65536]{0}', space=vmem, size = 0x10000, scoped, tag = 'input window, operand 1, single buffered']
    #allocation7 [shape = 's32[1]{0}', space=sflag, size = 0x4, scoped, tag = 'scoped memory for tpu_custom_call.1']
    #allocation8 [shape = 'u8[8192]{0}', space=vmem, size = 0x2000, scoped, tag = 'output window, operand 0, single buffered']
    %8 = vsyncpa [#allocation4], 0
    %9 = vsyncpa [#allocation7], 0
    %10 = vsyncpa [#allocation5], 0
    // Predicated region
    $region2: #{tpu_custom_call.1} parent=1 // pred_check
      _
    $region3: #{tpu_custom_call.1} parent=1 // pred_check_branch
      %12 = sbr.rel (0) target = $region5
    $region4: #{tpu_custom_call.1} parent=1 // pred_region
      %s14 = ssub.s32 256, 256
      %15 = vsyncadd [#allocation4], %s14
      %s16 = sshll.u32 [#allocation3], 4
      %s17 = int_to_ptr.vmem [resolvable:$true] %s16
      %22 = dma.hbm_to_vmem [thread:$0]  %s0, 256, %s17, [#allocation4], 128, 128, 8
    $region5: #{tpu_custom_call.1} parent=1 // pred_fallthru
      _
    // Predicated region
    $region6: #{tpu_custom_call.1} parent=1 // pred_check
      _
    $region7: #{tpu_custom_call.1} parent=1 // pred_check_branch
      %24 = sbr.rel (0) target = $region9
    $region8: #{tpu_custom_call.1} parent=1 // pred_region
      %s26 = ssub.s32 2048, 2048
      %27 = vsyncadd [#allocation7], %s26
      %s28 = sshll.u32 [#allocation6], 4
      %s29 = int_to_ptr.vmem [resolvable:$true] %s28
      %34 = dma.hbm_to_vmem [thread:$0]  %s1, 2048, %s29, [#allocation7], 128, 128, 8
    $region9: #{tpu_custom_call.1} parent=1 // pred_fallthru
      _
    // Predicated region
    $region10: #{tpu_custom_call.1} parent=1 // pred_check
      _
    $region11: #{tpu_custom_call.1} parent=1 // pred_check_branch
      %36 = sbr.rel (0) target = $region13
    $region12: #{tpu_custom_call.1} parent=1 // pred_region
      _
    $region13: #{tpu_custom_call.1} parent=1 // pred_fallthru
      _
    // Predicated region
    $region14: #{tpu_custom_call.1} parent=1 // pred_check
      _
    $region15: #{tpu_custom_call.1} parent=1 // pred_check_branch
      %38 = sbr.rel (0) target = $region17
    $region16: #{tpu_custom_call.1} parent=1 // pred_region
      %39 = dma.done [#allocation4], 256
    $region17: #{tpu_custom_call.1} parent=1 // pred_fallthru
      _
    // Predicated region
    $region18: #{tpu_custom_call.1} parent=1 // pred_check
      _
    $region19: #{tpu_custom_call.1} parent=1 // pred_check_branch
      %41 = sbr.rel (0) target = $region21
    $region20: #{tpu_custom_call.1} parent=1 // pred_region
      %42 = dma.done [#allocation7], 2048
    $region21: #{tpu_custom_call.1} parent=1 // pred_fallthru
      _
    %p43 = scmp.eq.s32.totalorder 0, 0
    // Predicated region
    $region22: #{tpu_custom_call.1} parent=1 // pred_check
      %p44 = pneg %p43
    $region23: #{tpu_custom_call.1} parent=1 // pred_check_branch
      %46 = sbr.rel (%p44) target = $region25
    $region24: #{tpu_custom_call.1} parent=1 // pred_region
      %47 = vst [vmem:[#allocation2] sm:$0xff] 0.0
      %48 = vst [vmem:[#allocation2 + $0x8] sm:$0xff] 0.0
    $region25: #{tpu_custom_call.1} parent=1 // pred_fallthru
      _
    %v49 = vld [vmem:[#allocation2] sm:$0xff]
    %v50 = vld [vmem:[#allocation2 + $0x8] sm:$0xff]
    %v51 = vld [vmem:[#allocation3] sm:$0xff]
    %v52 = vld [vmem:[#allocation3 + $0x8] sm:$0xff]
    %v53 = vld [vmem:[#allocation6] sm:$0xff]
    %v54 = vld [vmem:[#allocation6 + $0x8] sm:$0xff]
    %v55 = vld [vmem:[#allocation6 + $0x10] sm:$0xff]
    %v56 = vld [vmem:[#allocation6 + $0x18] sm:$0xff]
    %v57 = vld [vmem:[#allocation6 + $0x20] sm:$0xff]
    %v58 = vld [vmem:[#allocation6 + $0x28] sm:$0xff]
    %v59 = vld [vmem:[#allocation6 + $0x30] sm:$0xff]
    %v60 = vld [vmem:[#allocation6 + $0x38] sm:$0xff]
    %v61 = vld [vmem:[#allocation6 + $0x40] sm:$0xff]
    %v62 = vld [vmem:[#allocation6 + $0x48] sm:$0xff]
    %v63 = vld [vmem:[#allocation6 + $0x50] sm:$0xff]
    %v64 = vld [vmem:[#allocation6 + $0x58] sm:$0xff]
    %v65 = vld [vmem:[#allocation6 + $0x60] sm:$0xff]
    %v66 = vld [vmem:[#allocation6 + $0x68] sm:$0xff]
    %v67 = vld [vmem:[#allocation6 + $0x70] sm:$0xff]
    %v68 = vld [vmem:[#allocation6 + $0x78] sm:$0xff]
    %69 = vmatprep.subr.mxu0 0.0
    %70 = vmatpush1.xpose.msra.mxu0 %v68
    %71 = vmatprep.subr.mxu0 0.0
    %72 = vmatpush1.xpose.msra.mxu0 %v67
    %73 = vmatprep.subr.mxu0 0.0
    %74 = vmatpush1.xpose.msra.mxu0 %v66
    %75 = vmatprep.subr.mxu0 0.0
    %76 = vmatpush1.xpose.msra.mxu0 %v65
    %77 = vmatprep.subr.mxu0 0.0
    %78 = vmatpush1.xpose.msra.mxu0 %v64
    %79 = vmatprep.subr.mxu0 0.0
    %80 = vmatpush1.xpose.msra.mxu0 %v63
    %81 = vmatprep.subr.mxu0 0.0
    %82 = vmatpush1.xpose.msra.mxu0 %v62
    %83 = vmatprep.subr.mxu0 0.0
    %84 = vmatpush1.xpose.msra.mxu0 %v61
    %85 = vmatprep.subr.mxu0 0.0
    %86 = vmatpush1.xpose.msra.mxu0 %v60
    %87 = vmatprep.subr.mxu0 0.0
    %88 = vmatpush1.xpose.msra.mxu0 %v59
    %89 = vmatprep.subr.mxu0 0.0
    %90 = vmatpush1.xpose.msra.mxu0 %v58
    %91 = vmatprep.subr.mxu0 0.0
    %92 = vmatpush1.xpose.msra.mxu0 %v57
    %93 = vmatprep.subr.mxu0 0.0
    %94 = vmatpush1.xpose.msra.mxu0 %v56
    %95 = vmatprep.subr.mxu0 0.0
    %96 = vmatpush1.xpose.msra.mxu0 %v55
    %97 = vmatprep.subr.mxu0 0.0
    %98 = vmatpush1.xpose.msra.mxu0 %v54
    %99 = vmatprep.subr.mxu0 0.0
    %100 = vmatpush1.xpose.msra.mxu0 %v53
    %101 = vmatprep.subr.mxu0 0.0
    %102 = vmatpush2.xpose.msra.mxu0 0.0
    %103 = vmatprep.subr.mxu0 0.0
    %104 = vmatpush2.xpose.msra.mxu0 0.0
    %105 = vmatprep.subr.mxu0 0.0
    %106 = vmatpush2.xpose.msra.mxu0 0.0
    %107 = vmatprep.subr.mxu0 0.0
    %108 = vmatpush2.xpose.msra.mxu0 0.0
    %109 = vmatprep.subr.mxu0 0.0
    %110 = vmatpush2.xpose.msra.mxu0 0.0
    %111 = vmatprep.subr.mxu0 0.0
    %112 = vmatpush2.xpose.msra.mxu0 0.0
    %113 = vmatprep.subr.mxu0 0.0
    %114 = vmatpush2.xpose.msra.mxu0 0.0
    %115 = vmatprep.subr.mxu0 0.0
    %116 = vmatpush2.xpose.msra.mxu0 0.0
    %117 = vmatprep.subr.mxu0 0.0
    %118 = vmatpush2.xpose.msra.mxu0 0.0
    %119 = vmatprep.subr.mxu0 0.0
    %120 = vmatpush2.xpose.msra.mxu0 0.0
    %121 = vmatprep.subr.mxu0 0.0
    %122 = vmatpush2.xpose.msra.mxu0 0.0
    %123 = vmatprep.subr.mxu0 0.0
    %124 = vmatpush2.xpose.msra.mxu0 0.0
    %125 = vmatprep.subr.mxu0 0.0
    %126 = vmatpush2.xpose.msra.mxu0 0.0
    %127 = vmatprep.subr.mxu0 0.0
    %128 = vmatpush2.xpose.msra.mxu0 0.0
    %129 = vmatprep.subr.mxu0 0.0
    %130 = vmatpush2.xpose.msra.mxu0 0.0
    %131 = vmatprep.subr.mxu0 0.0
    %132 = vmatpush2.xpose.msra.mxu0 0.0
    %133 = vmatprep.mubr.f32.mxu0 0.0
    %134 = vmatmul.mubr.f32.gmra.mxu0 %v51
    %v135 = vpop.f32.mrf.mxu0
    %v136 = vadd.f32 0.0, %v135
    %v137 = vpop.f32.mrf.mxu0
    %138 = vmatprep.mubr.f32.mxu0 0.0
    %139 = vmatmul.mubr.f32.gmra.mxu0 %v52
    %v140 = vpop.f32.mrf.mxu0
    %v141 = vadd.f32 0.0, %v140
    %v142 = vpop.f32.mrf.mxu0
    %143 = vdwg.mxu0
    %v144 = vadd.f32 %v49, %v136
    %v145 = vadd.f32 %v50, %v141
    %146 = vst [vmem:[#allocation2] sm:$0xff] %v144
    %147 = vst [vmem:[#allocation2 + $0x8] sm:$0xff] %v145
    // Predicated region
    $region26: #{tpu_custom_call.1} parent=1 // pred_check
      %p148 = pneg %p43
    $region27: #{tpu_custom_call.1} parent=1 // pred_check_branch
      %150 = sbr.rel (%p148) target = $region29
    $region28: #{tpu_custom_call.1} parent=1 // pred_region
      %v151 = vld [vmem:[#allocation2] sm:$0xff]
      %v152 = vld [vmem:[#allocation2 + $0x8] sm:$0xff]
      %v153 = vld [vmem:[%s2] sm:$0x1]
      %v155 = vlaneseq
      %v156 = vshrl.u32 %v155, 7
      %v157 = vsub.s32 0, %v156
      %v158 = vrot.slane %v153, %v157
      %v160 = vadd.f32 %v151, %v158
      %v161 = vadd.f32 %v152, %v158
      %v162 = vmul.f32 %v160, 0.5
      %v163 = vmul.f32 %v161, 0.5
      %v164 = vmul.f32 %v160, 0.70710677
      %v165 = vmul.f32 %v161, 0.70710677
      %v166 = verf.f32.pop %v164
      %v167 = verf.f32.pop %v165
      %v168 = vadd.f32 %v166, 1.0
      %v169 = vadd.f32 %v167, 1.0
      %v170 = vmul.f32 %v162, %v168
      %v171 = vmul.f32 %v163, %v169
      %172 = vst [vmem:[#allocation8] sm:$0xff] %v170
      %173 = vst [vmem:[#allocation8 + $0x8] sm:$0xff] %v171
    $region29: #{tpu_custom_call.1} parent=1 // pred_fallthru
      _
    // Predicated region
    $region30: #{tpu_custom_call.1} parent=1 // pred_check
      _
    $region31: #{tpu_custom_call.1} parent=1 // pred_check_branch
      %175 = sbr.rel (0) target = $region33
    $region32: #{tpu_custom_call.1} parent=1 // pred_region
      %s177 = ssub.s32 256, 256
      %178 = vsyncadd [#allocation5], %s177
      %s179 = sshll.u32 [#allocation8], 4
      %s180 = int_to_ptr.vmem [resolvable:$true] %s179
      %185 = dma.vmem_to_hbm [thread:$0]  %s180, 256, %s3, [#allocation5], 128, 128, 8
    $region33: #{tpu_custom_call.1} parent=1 // pred_fallthru
      _
    // Predicated region
    $region34: #{tpu_custom_call.1} parent=1 // pred_check
      _
    $region35: #{tpu_custom_call.1} parent=1 // pred_check_branch
      %187 = sbr.rel (0) target = $region37
    $region36: #{tpu_custom_call.1} parent=1 // pred_region
      %188 = dma.done [#allocation5], 256
    $region37: #{tpu_custom_call.1} parent=1 // pred_fallthru
      _
    %189 = vsyncpa [#allocation4], 1
    %190 = vsyncpa [#allocation7], 1
    %191 = vsyncpa [#allocation5], 1

</llo_original>
